<compile_context>
chip_gen: v7x
topology: tpu7x:2x2x1
jax: 0.10.0
libtpu: 0.0.40
codegen_flags: <defaults>
</compile_context>

<pallas_src>
import math
import functools

import jax
import jax.numpy as jnp
from jax import lax
from jax.experimental import pallas as pl
from jax.experimental.pallas import tpu as pltpu


def _cdiv(a, b):
    return -(-a // b)


def _round_up(x, m):
    return ((x + m - 1) // m) * m


def _patch_embed_kernel(p_ref, w_ref, params_ref, o_ref, *, eps):
    """One M-tile: patchify GEMM + conv bias + LayerNorm over OC.

    p_ref:      (TM, K)   patch rows (bf16)
    w_ref:      (K, OC)   flattened conv weight, transposed (bf16), grid-resident
    params_ref: (3, OC)   row 0 = conv bias, row 1 = LN gamma, row 2 = LN beta (f32)
    o_ref:      (TM, OC)  output tile
    """
    y = jnp.dot(p_ref[...], w_ref[...], preferred_element_type=jnp.float32)
    y = y + params_ref[0:1, :]                                  # conv bias

    inv_n = 1.0 / y.shape[-1]
    mean = jnp.sum(y, axis=-1, keepdims=True) * inv_n
    d = y - mean
    var = jnp.sum(d * d, axis=-1, keepdims=True) * inv_n        # two-pass variance
    y_hat = d * lax.rsqrt(var + eps)

    o_ref[...] = (y_hat * params_ref[1:2, :] + params_ref[2:3, :]).astype(o_ref.dtype)


def patch_embedding_forward(x, conv_w, conv_b, ln_gamma, ln_beta, *,
                            patch_size, embed_shape, eps=1e-5,
                            tm=512, mxu_dtype=jnp.bfloat16, out_dtype=None):
    """x: (B, C, H, W) float32 (NCHW, as in PyTorch).

    Returns (B, H//p, W//p, *embed_shape), matching the PyTorch module.
    """
    B, C, H, W = x.shape
    p = patch_size
    Hp, Wp = H // p, W // p
    OC = math.prod(embed_shape)
    K = C * p * p
    M = B * Hp * Wp
    out_dtype = x.dtype if out_dtype is None else out_dtype

    # ---- wrapper glue: im2col (single transpose, fused with the bf16 cast) ------
    # (B, C, Hp, p, Wp, p) -> (B, Hp, Wp, C, p, p) -> (M, K); column order (c, kh, kw)
    # matches the flattening of the Conv2d weight (OC, C, p, p).
    patches = (x.reshape(B, C, Hp, p, Wp, p)
                 .transpose(0, 2, 4, 1, 3, 5)
                 .reshape(M, K)).astype(mxu_dtype)
    w2d = conv_w.reshape(OC, K).T.astype(mxu_dtype)             # (K, OC)
    params = jnp.stack([conv_b.reshape(-1),
                        ln_gamma.reshape(-1),
                        ln_beta.reshape(-1)]).astype(jnp.float32)   # (3, OC)

    # ---- tile size & generation-aware VMEM budget --------------------------------
    try:
        vmem_cap = int(pltpu.get_tpu_info().vmem_capacity_bytes)
    except Exception:
        vmem_cap = 64 * 2 ** 20                 # v7x-safe fallback (64 MiB / TC)
    vmem_budget = int(vmem_cap * 0.75)

    # Keep >= 2 grid steps when possible so both v7x TensorCores get work.
    tm = max(8, min(int(tm), _round_up(_cdiv(M, 2), 8)))
    tm = _round_up(tm, 8)

    in_b = jnp.dtype(mxu_dtype).itemsize
    out_b = jnp.dtype(out_dtype).itemsize

    def footprint(t):
        return (2 * t * K * in_b                # patch tiles (double-buffered)
                + 2 * K * OC * in_b             # resident weight (pipeline allocs 2 bufs)
                + 2 * 8 * OC * 4                # packed params (sublane-padded)
                + 2 * t * OC * out_b            # output tiles (double-buffered)
                + 4 * t * OC * 4)               # f32 GEMM result + LN temporaries

    while footprint(tm) > vmem_budget and tm > 8:
        tm = max(8, _round_up(tm // 2, 8))
    vmem_limit = int(min(max(2 * footprint(tm), 16 * 2 ** 20), vmem_budget))

    grid = (_cdiv(M, tm),)

    out_flat = pl.pallas_call(
        functools.partial(_patch_embed_kernel, eps=eps),
        out_shape=jax.ShapeDtypeStruct((M, OC), out_dtype),
        grid_spec=pltpu.PrefetchScalarGridSpec(
            num_scalar_prefetch=0,
            grid=grid,
            in_specs=[
                pl.BlockSpec((tm, K), lambda i: (i, 0)),        # patch tile
                pl.BlockSpec((K, OC), lambda i: (0, 0)),        # weight (resident)
                pl.BlockSpec((3, OC), lambda i: (0, 0)),        # bias / gamma / beta
            ],
            out_specs=pl.BlockSpec((tm, OC), lambda i: (i, 0)),
        ),
        compiler_params=pltpu.CompilerParams(
            dimension_semantics=("parallel",),
            vmem_limit_bytes=vmem_limit),
    )(patches, w2d, params)

    # (M, OC) -> (B, Hp, Wp, *embed_shape): free row-major reshape, no de-pad slice.
    return out_flat.reshape(B, Hp, Wp, *embed_shape)


def _reference_forward(x, conv_w, conv_b, ln_gamma, ln_beta, *,
                       patch_size, embed_shape, eps=1e-5,
                       mxu_dtype=jnp.float32):
    """Pure-JAX reference mirroring the PyTorch forward (optionally bf16 GEMM)."""
    B, C, H, W = x.shape
    p = patch_size
    Hp, Wp = H // p, W // p
    OC = math.prod(embed_shape)
    K = C * p * p
    patches = (x.reshape(B, C, Hp, p, Wp, p)
                 .transpose(0, 2, 4, 1, 3, 5)
                 .reshape(-1, K)).astype(mxu_dtype)
    w2d = conv_w.reshape(OC, K).T.astype(mxu_dtype)
    y = jnp.dot(patches, w2d, preferred_element_type=jnp.float32)
    y = y + conv_b.reshape(1, OC).astype(jnp.float32)
    mean = y.mean(-1, keepdims=True)
    var = ((y - mean) ** 2).mean(-1, keepdims=True)
    y = (y - mean) / jnp.sqrt(var + eps)
    y = y * ln_gamma.reshape(1, OC) + ln_beta.reshape(1, OC)
    return y.astype(x.dtype).reshape(B, Hp, Wp, *embed_shape)


if __name__ == "__main__":
    # Small shapes consistent with the module:
    #   img_size=16, patch_size=4, in_chans=4, embed_shape=(4, 4, 2) -> OC=32
    img_size, patch_size, in_chans = 16, 4, 4
    embed_shape = (4, 4, 2)
    B = 2
    OC = math.prod(embed_shape)

    key = jax.random.PRNGKey(0)
    kx, kw, kb, kg, kbeta = jax.random.split(key, 5)

    x = jax.random.normal(kx, (B, in_chans, img_size, img_size), dtype=jnp.float32)

    fan_in = in_chans * patch_size * patch_size
    conv_w = (jax.random.normal(kw, (OC, in_chans, patch_size, patch_size),
                                dtype=jnp.float32) / math.sqrt(fan_in))
    conv_b = jax.random.normal(kb, (OC,), dtype=jnp.float32) * 0.01
    ln_gamma = 1.0 + 0.1 * jax.random.normal(kg, embed_shape, dtype=jnp.float32)
    ln_beta = 0.1 * jax.random.normal(kbeta, embed_shape, dtype=jnp.float32)

    out = patch_embedding_forward(
        x, conv_w, conv_b, ln_gamma, ln_beta,
        patch_size=patch_size, embed_shape=embed_shape)
    out = jax.block_until_ready(out)

    Hp = Wp = img_size // patch_size
    assert out.shape == (B, Hp, Wp, *embed_shape)

    # Matched-precision reference (same bf16 GEMM inputs, f32 accumulation/LN).
    ref_bf16 = _reference_forward(
        x, conv_w, conv_b, ln_gamma, ln_beta,
        patch_size=patch_size, embed_shape=embed_shape, mxu_dtype=jnp.bfloat16)
    assert jnp.allclose(out, ref_bf16, atol=2e-3, rtol=2e-3), "mismatch vs bf16-matched reference"

    # Full-precision (PyTorch-semantics) reference — loose tolerance covers the
    # bf16 quantization of the GEMM inputs.
    ref_f32 = _reference_forward(
        x, conv_w, conv_b, ln_gamma, ln_beta,
        patch_size=patch_size, embed_shape=embed_shape, mxu_dtype=jnp.float32)
    assert jnp.allclose(out, ref_f32, atol=1e-1, rtol=1e-1), "mismatch vs f32 reference"

    # Optional bf16-output path (feedback item): halves the output HBM stream.
    out_bf16 = patch_embedding_forward(
        x, conv_w, conv_b, ln_gamma, ln_beta,
        patch_size=patch_size, embed_shape=embed_shape, out_dtype=jnp.bfloat16)
    out_bf16 = jax.block_until_ready(out_bf16)
    assert out_bf16.dtype == jnp.bfloat16
    assert jnp.allclose(out_bf16.astype(jnp.float32), ref_bf16, atol=5e-2, rtol=5e-2), \
        "mismatch in bf16-output path"

    print("KERNEL_OK")
</pallas_src>

<mosaic_0001>
module attributes {stable_mosaic.version = 11 : i64} {
  func.func @_patch_embed_kernel(%arg0: i32, %arg1: memref<16x64xbf16, #tpu.memory_space<vmem>>, %arg2: memref<64x32xbf16, #tpu.memory_space<vmem>>, %arg3: memref<3x32xf32, #tpu.memory_space<vmem>>, %arg4: memref<16x32xf32, #tpu.memory_space<vmem>>) attributes {dimension_semantics = [#tpu.dimension_semantics<parallel>], iteration_bounds = array<i64: 2>, scalar_prefetch = 0 : i64, scratch_operands = 0 : i64, tpu.core_type = #tpu.core_type<tc>, window_params = [{transform_indices = @transform_0, window_bounds = array<i64: 16, 64>}, {pipeline_mode = #tpu.pipeline_mode<synchronous>, transform_indices = @transform_1, window_bounds = array<i64: 64, 32>}, {pipeline_mode = #tpu.pipeline_mode<synchronous>, transform_indices = @transform_2, window_bounds = array<i64: 3, 32>}, {transform_indices = @transform_3, window_bounds = array<i64: 16, 32>}]} {
    %c0 = arith.constant 0 : index
    %c0_0 = arith.constant 0 : index
    %0 = vector.load %arg1[%c0, %c0_0] : memref<16x64xbf16, #tpu.memory_space<vmem>>, vector<16x64xbf16>
    %c0_1 = arith.constant 0 : index
    %c0_2 = arith.constant 0 : index
    %1 = vector.load %arg2[%c0_1, %c0_2] : memref<64x32xbf16, #tpu.memory_space<vmem>>, vector<64x32xbf16>
    %cst = arith.constant dense<0.000000e+00> : vector<16x32xf32>
    %2 = tpu.matmul %0, %1, %cst {dimension_numbers = #tpu.dot_dimension_numbers<[1], [0], [0], [1], [0, 0, 1, 1], [], []>} : vector<16x64xbf16>, vector<64x32xbf16>, vector<16x32xf32> -> vector<16x32xf32>
    %c0_3 = arith.constant 0 : index
    %c0_4 = arith.constant 0 : index
    %3 = vector.load %arg3[%c0_3, %c0_4] : memref<3x32xf32, #tpu.memory_space<vmem>>, vector<1x32xf32>
    %4 = vector.broadcast %3 : vector<1x32xf32> to vector<16x32xf32>
    %5 = arith.addf %2, %4 : vector<16x32xf32>
    %cst_5 = arith.constant dense<0.000000e+00> : vector<16xf32>
    %6 = vector.multi_reduction <add>, %5, %cst_5 [1] : vector<16x32xf32> to vector<16xf32>
    %7 = vector.shape_cast %6 : vector<16xf32> to vector<16x1xf32>
    %cst_6 = arith.constant 3.125000e-02 : f32
    %8 = vector.broadcast %cst_6 : f32 to vector<16x1xf32>
    %9 = arith.mulf %7, %8 : vector<16x1xf32>
    %10 = vector.broadcast %9 : vector<16x1xf32> to vector<16x32xf32>
    %11 = arith.subf %5, %10 : vector<16x32xf32>
    %12 = arith.mulf %11, %11 : vector<16x32xf32>
    %cst_7 = arith.constant dense<0.000000e+00> : vector<16xf32>
    %13 = vector.multi_reduction <add>, %12, %cst_7 [1] : vector<16x32xf32> to vector<16xf32>
    %14 = vector.shape_cast %13 : vector<16xf32> to vector<16x1xf32>
    %cst_8 = arith.constant 3.125000e-02 : f32
    %15 = vector.broadcast %cst_8 : f32 to vector<16x1xf32>
    %16 = arith.mulf %14, %15 : vector<16x1xf32>
    %cst_9 = arith.constant 9.99999974E-6 : f32
    %17 = vector.broadcast %cst_9 : f32 to vector<16x1xf32>
    %18 = arith.addf %16, %17 : vector<16x1xf32>
    %19 = math.rsqrt %18 : vector<16x1xf32>
    %20 = vector.broadcast %19 : vector<16x1xf32> to vector<16x32xf32>
    %21 = arith.mulf %11, %20 : vector<16x32xf32>
    %c1 = arith.constant 1 : index
    %c0_10 = arith.constant 0 : index
    %22 = vector.load %arg3[%c1, %c0_10] : memref<3x32xf32, #tpu.memory_space<vmem>>, vector<1x32xf32>
    %23 = vector.broadcast %22 : vector<1x32xf32> to vector<16x32xf32>
    %24 = arith.mulf %21, %23 : vector<16x32xf32>
    %c2 = arith.constant 2 : index
    %c0_11 = arith.constant 0 : index
    %25 = vector.load %arg3[%c2, %c0_11] : memref<3x32xf32, #tpu.memory_space<vmem>>, vector<1x32xf32>
    %26 = vector.broadcast %25 : vector<1x32xf32> to vector<16x32xf32>
    %27 = arith.addf %24, %26 : vector<16x32xf32>
    %c0_12 = arith.constant 0 : index
    %c0_13 = arith.constant 0 : index
    %28 = vector.load %arg4[%c0_12, %c0_13] : memref<16x32xf32, #tpu.memory_space<vmem>>, vector<16x32xf32>
    tpu.vector_store %arg4[%c0_12, %c0_13], %27 {strides = array<i32>} : memref<16x32xf32, #tpu.memory_space<vmem>>, vector<16x32xf32>,
    return
  }
  func.func @transform_0(%arg0: i32) -> (i32, i32) {
    %c0_i32 = arith.constant 0 : i32
    %c0_i32_0 = arith.constant 0 : i32
    return %arg0, %c0_i32 : i32, i32
  }
  func.func @transform_1(%arg0: i32) -> (i32, i32) {
    %c0_i32 = arith.constant 0 : i32
    %c0_i32_0 = arith.constant 0 : i32
    %c0_i32_1 = arith.constant 0 : i32
    return %c0_i32, %c0_i32_0 : i32, i32
  }
  func.func @transform_2(%arg0: i32) -> (i32, i32) {
    %c0_i32 = arith.constant 0 : i32
    %c0_i32_0 = arith.constant 0 : i32
    %c0_i32_1 = arith.constant 0 : i32
    return %c0_i32, %c0_i32_0 : i32, i32
  }
  func.func @transform_3(%arg0: i32) -> (i32, i32) {
    %c0_i32 = arith.constant 0 : i32
    %c0_i32_0 = arith.constant 0 : i32
    return %arg0, %c0_i32 : i32, i32
  }
}

</mosaic_0001>

<llo_original>
// kernel: tpu_custom_call.1
$region0: #{tpu_custom_call.1}
  #allocation0 [shape = 'u32[]', space=smem, size = 0x4, offset = 0x4, fixed_abs, tag = 'smem constant byte address 0x4 - core index']
  #allocation1 [shape = 'u32[144,128]{1,0:T(1,128)}', space=vmem, size = 0x12000, scoped, tag = 'internal scratch']
  %s0 = inlined_call_operand.vmem [shape: bf16[32,64], index: 0, kind: input, shape index: {}]
  %s1 = inlined_call_operand.vmem [shape: bf16[64,32], index: 1, kind: input, shape index: {}]
  %s2 = inlined_call_operand.vmem [shape: f32[3,32], index: 2, kind: input, shape index: {}]
  %s3 = inlined_call_operand.hbm [shape: f32[32,32], index: 3, kind: output, shape index: {}]
  %s4 = sld [smem:[#allocation0]]
  $region45: #{tpu_custom_call.1} parent=0
    _
  %s6 = ssub.s32 1, %s4
  %s7 = scalar_select 0, %s6, %s4
  $region1: #{tpu_custom_call.1} parent=0
    #allocation2 [shape = 'u8[16384]{0}', space=vmem, size = 0x4000, scoped, tag = 'output window, operand 0']
    #allocation3 [shape = 's32[2]{0}', space=sflag, size = 0x8, scoped, tag = 'scoped memory for tpu_custom_call.1']
    %8 = vsyncpa [#allocation3], 0
    %s9 = scalar_lea.sflag [#allocation3], 1
    %10 = vsyncpa %s9, 0
    loop: start=0, step=1, limit=4
    $region2: #{tpu_custom_call.1} parent=1 // loop_pre_header
      _
    $region3: #{tpu_custom_call.1} parent=1 // loop_header
      %s12 = sphi 0, %s16
      %p13 = scmp.ge.s32.totalorder %s12, 4
      %s22 = sphi 0, %s24
      %s25 = sphi 0, %s22
      %s26 = sphi 0, %s25
      %s42 = sphi 0, %s26
      %s46 = sphi 0, %s46
      %s48 = sphi 0, %s46
      %s49 = sphi 0, %s48
      %s63 = sphi 0, %s49
      %s67 = sphi 0, %s67
      %s69 = sphi 0, %s67
      %s70 = sphi 0, %s69
      %s84 = sphi 0, %s70
      %s90 = sphi 0, %s92
      %s93 = sphi 0, %s90
      %s94 = sphi 0, %s93
      %s110 = sphi 0, %s94
    $region4: #{tpu_custom_call.1} parent=1 // loop_header_branch
      %15 = sbr.rel (%p13) target = $region8
    $region5: #{tpu_custom_call.1} parent=1 // loop_body
      %s17 = ssub.s32 %s12, 1
      %s18 = ssub.s32 %s12, 2
      %s19 = sadd.s32 %s12, 1
      %s20 = ssub.s32 %s12, %s19
      %p21 = scmp.eq.s32.totalorder %s20, 0
      %s23 = sadd.s32 %s22, 1
      %s24 = scalar_select %p21, %s22, %s23
      %p27 = pneg %p21
      %p28 = scmp.eq.s32.totalorder %s12, 1
      %p29 = por %p27, %p28
      %p30 = scmp.ne.s32.totalorder %s22, %s25
      %p31 = scmp.eq.s32.totalorder %s12, 0
      %p32 = por %p30, %p31
      %p33 = scmp.ne.s32.totalorder %s22, %s25
      %p34 = scmp.eq.s32.totalorder %s17, 1
      %p35 = por %p33, %p34
      %p36 = scmp.ne.s32.totalorder %s25, %s26
      %p37 = scmp.eq.s32.totalorder %s17, 0
      %p38 = por %p36, %p37
      %p39 = scmp.ne.s32.totalorder %s25, %s26
      %p40 = scmp.eq.s32.totalorder %s18, 1
      %p41 = por %p39, %p40
      %p43 = scmp.ne.s32.totalorder %s26, %s42
      %p44 = scmp.eq.s32.totalorder %s18, 0
      %p45 = por %p43, %p44
      %s47 = sadd.s32 %s46, 1
      %p50 = scmp.eq.s32.totalorder %s12, 1
      %p51 = scmp.ne.s32.totalorder %s46, %s48
      %p52 = scmp.eq.s32.totalorder %s12, 0
      %p53 = por %p51, %p52
      %p54 = scmp.ne.s32.totalorder %s46, %s48
      %p55 = scmp.eq.s32.totalorder %s17, 1
      %p56 = por %p54, %p55
      %p57 = scmp.ne.s32.totalorder %s48, %s49
      %p58 = scmp.eq.s32.totalorder %s17, 0
      %p59 = por %p57, %p58
      %p60 = scmp.ne.s32.totalorder %s48, %s49
      %p61 = scmp.eq.s32.totalorder %s18, 1
      %p62 = por %p60, %p61
      %p64 = scmp.ne.s32.totalorder %s49, %s63
      %p65 = scmp.eq.s32.totalorder %s18, 0
      %p66 = por %p64, %p65
      %s68 = sadd.s32 %s67, 1
      %p71 = scmp.eq.s32.totalorder %s12, 1
      %p72 = scmp.ne.s32.totalorder %s67, %s69
      %p73 = scmp.eq.s32.totalorder %s12, 0
      %p74 = por %p72, %p73
      %p75 = scmp.ne.s32.totalorder %s67, %s69
      %p76 = scmp.eq.s32.totalorder %s17, 1
      %p77 = por %p75, %p76
      %p78 = scmp.ne.s32.totalorder %s69, %s70
      %p79 = scmp.eq.s32.totalorder %s17, 0
      %p80 = por %p78, %p79
      %p81 = scmp.ne.s32.totalorder %s69, %s70
      %p82 = scmp.eq.s32.totalorder %s18, 1
      %p83 = por %p81, %p82
      %p85 = scmp.ne.s32.totalorder %s70, %s84
      %p86 = scmp.eq.s32.totalorder %s18, 0
      %p87 = por %p85, %p86
      %s88 = ssub.s32 %s12, %s19
      %p89 = scmp.eq.s32.totalorder %s88, 0
      %s91 = sadd.s32 %s90, 1
      %s92 = scalar_select %p89, %s90, %s91
      %p95 = pneg %p89
      %p96 = scmp.eq.s32.totalorder %s12, 1
      %p97 = por %p95, %p96
      %p98 = scmp.ne.s32.totalorder %s90, %s93
      %p99 = scmp.eq.s32.totalorder %s12, 0
      %p100 = por %p98, %p99
      %p101 = scmp.ne.s32.totalorder %s90, %s93
      %p102 = scmp.eq.s32.totalorder %s17, 1
      %p103 = por %p101, %p102
      %p104 = scmp.ne.s32.totalorder %s93, %s94
      %p105 = scmp.eq.s32.totalorder %s17, 0
      %p106 = por %p104, %p105
      %p107 = scmp.ne.s32.totalorder %s93, %s94
      %p108 = scmp.eq.s32.totalorder %s18, 1
      %p109 = por %p107, %p108
      %p111 = scmp.ne.s32.totalorder %s94, %s110
      %p112 = scmp.eq.s32.totalorder %s18, 0
      %p113 = por %p111, %p112
      %p114 = scmp.le.s32.totalorder 1, %s12
      %p115 = scmp.lt.s32.totalorder %s12, 3
      %p116 = pnand %p114, %p115
      %p117 = pneg %p116
      // Predicated region
      $region9: #{tpu_custom_call.1} parent=5 // pred_check
        _
      $region10: #{tpu_custom_call.1} parent=5 // pred_check_branch
        %119 = sbr.rel (%p116) target = $region12
      $region11: #{tpu_custom_call.1} parent=5 // pred_region
        %s120 = ssub.s32 %s12, 1
        // Predicated region
        $region13: #{tpu_custom_call.1} parent=11 // pred_check
          %p121 = pneg %p59
        $region14: #{tpu_custom_call.1} parent=11 // pred_check_branch
          %123 = sbr.rel (%p121) target = $region16
        $region15: #{tpu_custom_call.1} parent=11 // pred_region
          _
        $region16: #{tpu_custom_call.1} parent=11 // pred_fallthru
          _
        // Predicated region
        $region17: #{tpu_custom_call.1} parent=11 // pred_check
          %p124 = pneg %p80
        $region18: #{tpu_custom_call.1} parent=11 // pred_check_branch
          %126 = sbr.rel (%p124) target = $region20
        $region19: #{tpu_custom_call.1} parent=11 // pred_region
          _
        $region20: #{tpu_custom_call.1} parent=11 // pred_fallthru
          _
      $region12: #{tpu_custom_call.1} parent=5 // pred_fallthru
        _
      %p127 = scmp.lt.s32.totalorder %s12, 2
      // Predicated region
      $region21: #{tpu_custom_call.1} parent=5 // pred_check
        %p128 = pneg %p127
      $region22: #{tpu_custom_call.1} parent=5 // pred_check_branch
        %130 = sbr.rel (%p128) target = $region24
      $region23: #{tpu_custom_call.1} parent=5 // pred_region
        // Predicated region
        $region25: #{tpu_custom_call.1} parent=23 // pred_check
          %p131 = pneg %p32
        $region26: #{tpu_custom_call.1} parent=23 // pred_check_branch
          %133 = sbr.rel (%p131) target = $region28
        $region27: #{tpu_custom_call.1} parent=23 // pred_region
          %s134 = smul.u32 2, %s12
          %p135 = scmp.lt.s32.totalorder %s134, 3
          %s136 = scalar_select %p135, %s134, 3
          %s137 = smul.addr %s136, 4
          %s138 = scalar_lea.vmem %s0, %s137
          %s139 = smul.u32 2, %s12
        $region28: #{tpu_custom_call.1} parent=23 // pred_fallthru
          _
      $region24: #{tpu_custom_call.1} parent=5 // pred_fallthru
        _
      %p140 = scmp.le.s32.totalorder 1, %s12
      %p141 = scmp.lt.s32.totalorder %s12, 3
      %p142 = pnand %p140, %p141
      %p143 = pneg %p142
      // Predicated region
      $region29: #{tpu_custom_call.1} parent=5 // pred_check
        _
      $region30: #{tpu_custom_call.1} parent=5 // pred_check_branch
        %145 = sbr.rel (%p142) target = $region32
      $region31: #{tpu_custom_call.1} parent=5 // pred_region
        %s146 = ssub.s32 %s12, 1
        %s147 = smul.u32 2, %s17
        %p148 = scmp.lt.s32.totalorder %s147, 3
        %s149 = scalar_select %p148, %s147, 3
        %s150 = smul.addr %s149, 4
        %s151 = scalar_lea.vmem %s0, %s150
        %p152 = pneg %p38
        %p153 = pneg %p35
        %p154 = pneg %p59
        %p155 = pneg %p56
        %p156 = pneg %p80
        %p157 = pneg %p77
        %p158 = pneg %p106
        %p159 = pneg %p103
        %s160 = sand.u32 %s93, 1
        %s161 = scalar_lea.sflag [#allocation3], %s160
        %s162 = sand.u32 %s93, 1
        %s163 = smul.addr %s162, 16
        %s164 = scalar_lea.vmem [#allocation2], %s163
        %s165 = smul.u32 2, %s17
        %p166 = scmp.lt.s32.totalorder %s165, 3
        %s167 = scalar_select %p166, %s165, 3
        %s168 = smul.addr %s167, 4
        %s169 = scalar_lea.vmem %s0, %s168
        %s170 = smul.u32 2, %s17
        %s171 = smul.u32 2, %s17
        %v173 = vld [vmem:[%s169] sm:$0xf]
        %v174 = vld [vmem:[%s169 + $0x4] sm:$0xf]
        %v175 = vld [vmem:[%s1] sm:$0xf]
        %v176 = vld [vmem:[%s1 + $0x4] sm:$0xf]
        %v177 = vld [vmem:[%s1 + $0x8] sm:$0xf]
        %v178 = vld [vmem:[%s1 + $0xc] sm:$0xf]
        %v179 = vld [vmem:[%s1 + $0x10] sm:$0xf]
        %v180 = vld [vmem:[%s1 + $0x14] sm:$0xf]
        %v181 = vld [vmem:[%s1 + $0x18] sm:$0xf]
        %v182 = vld [vmem:[%s1 + $0x1c] sm:$0xf]
        %v183 = vld [vmem:[%s2] sm:$0x1]
        %v184 = vlaneseq
        %v185 = vshrl.u32 %v184, 7
        %v186 = vsub.s32 0, %v185
        %v187 = vrot.slane %v183, %v186
        %v190 = vunpack.c.l.b16 %v173
        %v191 = vunpack.c.l.b16 %v174
        %v192 = vpack.c.b16 %v191, %v190
        %v201 = vunpack.c.l.b16 %v175
        %v202 = vunpack.c.l.b16 %v176
        %v203 = vunpack.c.l.b16 %v177
        %v204 = vunpack.c.l.b16 %v178
        %v205 = vunpack.c.l.b16 %v179
        %v206 = vunpack.c.l.b16 %v180
        %v207 = vunpack.c.l.b16 %v181
        %v208 = vunpack.c.l.b16 %v182
        %v209 = vpack.c.b16 %v202, %v201
        %v210 = vpack.c.b16 %v204, %v203
        %v211 = vpack.c.b16 %v206, %v205
        %v212 = vpack.c.b16 %v208, %v207
        %vm217 = vcmask 523264
        %v219 = vsel %vm217, %v192, 0
        %221 = vmatprep.subr.bf16.mxu0 0
        %222 = vmatpush1.bf16.msra.mxu0 %v209
        %223 = vmatprep.subr.bf16.mxu0 0
        %224 = vmatpush1.bf16.msra.mxu0 %v210
        %225 = vmatprep.subr.bf16.mxu0 0
        %226 = vmatpush1.bf16.msra.mxu0 %v211
        %227 = vmatprep.subr.bf16.mxu0 0
        %228 = vmatpush1.bf16.msra.mxu0 %v212
        %229 = vmatprep.subr.bf16.mxu0 0
        %230 = vmatpush1.bf16.msra.mxu0 0
        %231 = vmatprep.subr.bf16.mxu0 0
        %232 = vmatpush1.bf16.msra.mxu0 0
        %233 = vmatprep.subr.bf16.mxu0 0
        %234 = vmatpush1.bf16.msra.mxu0 0
        %235 = vmatprep.subr.bf16.mxu0 0
        %236 = vmatpush1.bf16.msra.mxu0 0
        %237 = vmatprep.subr.bf16.mxu0 0
        %238 = vmatpush1.bf16.msra.mxu0 0
        %239 = vmatprep.subr.bf16.mxu0 0
        %240 = vmatpush1.bf16.msra.mxu0 0
        %241 = vmatprep.subr.bf16.mxu0 0
        %242 = vmatpush1.bf16.msra.mxu0 0
        %243 = vmatprep.subr.bf16.mxu0 0
        %244 = vmatpush1.bf16.msra.mxu0 0
        %245 = vmatprep.subr.bf16.mxu0 0
        %246 = vmatpush1.bf16.msra.mxu0 0
        %247 = vmatprep.subr.bf16.mxu0 0
        %248 = vmatpush1.bf16.msra.mxu0 0
        %249 = vmatprep.subr.bf16.mxu0 0
        %250 = vmatpush1.bf16.msra.mxu0 0
        %251 = vmatprep.subr.bf16.mxu0 0
        %252 = vmatpush1.bf16.msra.mxu0 0
        %253 = vmatprep.mubr.bf16.mxu0 0
        %254 = vmatmul.mubr.bf16.gmra.mrb[0].mxu0 %v219
        %v255 = vpop.f32.mrb[0].mxu0
        %v256 = vadd.f32 %v187, %v255
        %v257 = vpop.f32.mrb[0].mxu0
        %v258 = vpop.f32.mrb[0].mxu0
        %v259 = vadd.f32 %v187, %v258
        %v260 = vpop.f32.mrb[0].mxu0
        %261 = vdwg.mxu0
        %vm262 = vcmask 261120
        %v263 = vsel %vm262, %v256, 0.0
        %264 = vadd.xlane.f32.xlu0 %v263
        %v265 = vpop.xlane.xlu0 %264
        %v266 = vsel %vm262, %v259, 0.0
        %267 = vadd.xlane.f32.xlu0 %v266
        %v268 = vpop.xlane.xlu0 %267
        %v269 = vmul.f32 %v265, 0.03125
        %v270 = vmul.f32 %v268, 0.03125
        %v271 = vsub.f32 %v256, %v269
        %v272 = vsub.f32 %v259, %v270
        %v273 = vmul.f32 %v271, %v271
        %v274 = vmul.f32 %v272, %v272
        %v275 = vsel %vm262, %v273, 0.0
        %276 = vadd.xlane.f32.xlu0 %v275
        %v277 = vpop.xlane.xlu0 %276
        %v278 = vsel %vm262, %v274, 0.0
        %279 = vadd.xlane.f32.xlu0 %v278
        %v280 = vpop.xlane.xlu0 %279
        %v281 = vmul.f32 %v277, 0.03125
        %v282 = vmul.f32 %v280, 0.03125
        %v283 = vadd.f32 %v281, 1e-05
        %v284 = vadd.f32 %v282, 1e-05
        %v285 = vrsqrt.pop %v283
        %v286 = vrsqrt.pop %v284
        %v287 = vmul.f32 %v271, %v285
        %v288 = vmul.f32 %v272, %v286
        %v289 = vld [vmem:[%s2 + $0x1] sm:$0x1]
        %v290 = vlaneseq
        %v291 = vshrl.u32 %v290, 7
        %v292 = vsub.s32 0, %v291
        %v293 = vrot.slane %v289, %v292
        %v294 = vmul.f32 %v287, %v293
        %v295 = vmul.f32 %v288, %v293
        %v296 = vld [vmem:[%s2 + $0x2] sm:$0x1]
        %v297 = vlaneseq
        %v298 = vshrl.u32 %v297, 7
        %v299 = vsub.s32 0, %v298
        %v300 = vrot.slane %v296, %v299
        %v301 = vadd.f32 %v294, %v300
        %v302 = vadd.f32 %v295, %v300
        %303 = vst.msk [vmem:[%s164] sm:$0xff] %vm262, %v301
        %304 = vst.msk [vmem:[%s164 + $0x8] sm:$0xff] %vm262, %v302
        %s305 = sand.u32 %s93, 1
        %s306 = scalar_lea.sflag [#allocation3], %s305
        %s307 = sand.u32 %s93, 1
        %s308 = smul.addr %s307, 16
        %s309 = scalar_lea.vmem [#allocation2], %s308
        // Predicated region
        $region33: #{tpu_custom_call.1} parent=31 // pred_check
          %p310 = pneg %p103
        $region34: #{tpu_custom_call.1} parent=31 // pred_check_branch
          %312 = sbr.rel (%p310) target = $region36
        $region35: #{tpu_custom_call.1} parent=31 // pred_region
          %s313 = smul.u32 2, %s17
          %s315 = ssub.s32 256, 256
          %316 = vsyncadd %s306, %s315
          %s317 = smul.addr %s313, 128
          %s318 = scalar_lea.hbm %s3, %s317
          %s319 = sshll.u32 %s309, 4
          %s320 = int_to_ptr.vmem [resolvable:$true] %s319
          %325 = dma.vmem_to_hbm [thread:$0]  %s320, 256, %s318, %s306, 128, 128, 8
        $region36: #{tpu_custom_call.1} parent=31 // pred_fallthru
          _
      $region32: #{tpu_custom_call.1} parent=5 // pred_fallthru
        _
      %p326 = scmp.le.s32.totalorder 2, %s12
      // Predicated region
      $region37: #{tpu_custom_call.1} parent=5 // pred_check
        %p327 = pneg %p326
      $region38: #{tpu_custom_call.1} parent=5 // pred_check_branch
        %329 = sbr.rel (%p327) target = $region40
      $region39: #{tpu_custom_call.1} parent=5 // pred_region
        %s330 = ssub.s32 %s12, 2
        // Predicated region
        $region41: #{tpu_custom_call.1} parent=39 // pred_check
          %p331 = pneg %p109
        $region42: #{tpu_custom_call.1} parent=39 // pred_check_branch
          %333 = sbr.rel (%p331) target = $region44
        $region43: #{tpu_custom_call.1} parent=39 // pred_region
          %s334 = sand.u32 %s94, 1
          %s335 = scalar_lea.sflag [#allocation3], %s334
          %s336 = sand.u32 %s94, 1
          %s337 = smul.addr %s336, 16
          %s338 = scalar_lea.vmem [#allocation2], %s337
          %339 = dma.done %s335, 256
        $region44: #{tpu_custom_call.1} parent=39 // pred_fallthru
          _
      $region40: #{tpu_custom_call.1} parent=5 // pred_fallthru
        _
    $region6: #{tpu_custom_call.1} parent=1 // loop_footer
      %s16 = sadd.s32 1, %s12
    $region7: #{tpu_custom_call.1} parent=1 // loop_footer_branch
      %11 = sbr.rel target = $region3
    $region8: #{tpu_custom_call.1} parent=1 // loop_exit
      _
    %340 = vsyncpa [#allocation3], 1
    %s341 = scalar_lea.sflag [#allocation3], 1
    %342 = vsyncpa %s341, 1

</llo_original>
